<compile_context>
chip_gen: v5e
topology: v5e:2x2
jax: 0.10.0
libtpu: 0.0.40
codegen_flags: <defaults>
</compile_context>

<pallas_src>
import functools
import math

import jax
import jax.numpy as jnp
from jax.experimental import pallas as pl
from jax.experimental.pallas import tpu as pltpu

_EPS = 1e-12           # F.normalize eps
_EPS2 = _EPS * _EPS    # clamp on the *squared* norm == max(||x||, eps)
_NEG_INF = -1e30       # finite "-inf" for padded class columns


def _round_up(x, m):
    return (x + m - 1) // m * m


def _cdiv(a, b):
    return -(-a // b)


def _vmem_capacity_bytes():
    try:
        return int(pltpu.get_tpu_info().vmem_capacity_bytes)
    except Exception:
        return 64 * 1024 * 1024       # conservative (v7x-sized) fallback


def _default_batch_splits():
    # v7x has 2 TensorCores/chip: give the leading "parallel" axis 2 tiles so
    # both cores get work.  On 1-TC chips keep 1 so W is streamed exactly once.
    try:
        kind = jax.devices()[0].device_kind.lower()
    except Exception:
        return 1
    return 2 if ("v7" in kind or "7x" in kind) else 1


def arcface_loss_kernel(xn_ref, w_ref, tgt_ref, loss_ref,
                        m_acc, l_acc, t_acc, *,
                        s, cos_m, sin_m, th, mm, easy_margin,
                        block_b, block_c, tiles_per_split,
                        num_classes, has_class_pad):
    c_idx = pl.program_id(1)
    b_tile = pl.program_id(0) * tiles_per_split + pl.program_id(2)
    row0 = pl.multiple_of(b_tile * block_b, block_b)
    rows = pl.ds(row0, block_b)
    inv_s = 1.0 / s

    def s_phi(ct):
        # ArcFace margin on a (TB, 1) vector; ct == s * cos(theta_target).
        cos_t = ct * inv_s
        sin_t = jnp.sqrt(jnp.maximum(1.0 - cos_t * cos_t, 0.0))
        phi = cos_t * cos_m - sin_t * sin_m
        if easy_margin:
            phi = jnp.where(cos_t > 0.0, phi, cos_t)
        else:
            phi = jnp.where(cos_t > th, phi, cos_t - mm)
        return s * phi

    # ---- first class tile for this batch tile: reset resident accumulators --
    @pl.when(c_idx == 0)
    def _init():
        m_acc[rows, :] = jnp.full((block_b, 1), _NEG_INF, jnp.float32)
        l_acc[rows, :] = jnp.zeros((block_b, 1), jnp.float32)
        t_acc[rows, :] = jnp.zeros((block_b, 1), jnp.float32)

    # s * cosine on the MXU: bf16 xn  @  bf16 (s * normalized W)^T tile.
    z = jnp.dot(xn_ref[...], w_ref[...], preferred_element_type=jnp.float32)
    tb, tc = z.shape

    col = jax.lax.broadcasted_iota(jnp.int32, (tb, tc), 1)        # tile-local ids
    if has_class_pad:
        z = jnp.where(col < num_classes - c_idx * block_c, z, _NEG_INF)

    # One-hot target handling: gather s*cos_tgt, apply the margin only there.
    is_tgt = col == (tgt_ref[...] - c_idx * block_c)
    ct = jnp.sum(jnp.where(is_tgt, z, 0.0), axis=-1, keepdims=True)   # (TB, 1)
    delta = s_phi(ct) - ct                                            # (TB, 1)
    z = z + jnp.where(is_tgt, delta, 0.0)

    # ---- online softmax over the class axis ---------------------------------
    m_old = m_acc[rows, :]
    m_new = jnp.maximum(m_old, jnp.max(z, axis=-1, keepdims=True))
    alpha = jnp.exp(m_old - m_new)
    l_new = alpha * l_acc[rows, :] + jnp.sum(jnp.exp(z - m_new),
                                             axis=-1, keepdims=True)
    t_new = t_acc[rows, :] + ct
    m_acc[rows, :] = m_new
    l_acc[rows, :] = l_new
    t_acc[rows, :] = t_new

    # Per-sample CE so far (cheap (TB,1) math); the value written on the last
    # class tile is the final one.
    loss_ref[...] = m_new + jnp.log(l_new) - s_phi(t_new)


def arcface_loss(x, weight, target, *, margin=0.5, scale=30.0, easy_margin=True,
                 block_b=None, block_c=None, batch_splits=None):
    """Pallas-backed ArcFaceLoss.forward.

    x: (B, D) float, weight: (C, D) float, target: (B,) int -> scalar mean CE.
    """
    B, D = x.shape
    C, D2 = weight.shape
    assert D == D2, (D, D2)

    vmem_cap = _vmem_capacity_bytes()

    if block_b is None:
        # >= 2 batch tiles when possible (feeds both v7x cores), capped at 256.
        block_b = min(256, max(8, _round_up(_cdiv(B, 2), 8)))
    block_b = _round_up(int(block_b), 8)

    if block_c is None:
        # Largest lane tile whose double-buffered bf16 W slab + f32 logit
        # temporaries fit in ~1/3 of VMEM; prefer one that divides C so the
        # class-padding mask can be skipped.
        cap = 2048
        while cap > 256 and (2 * 2 * D * cap + 6 * 4 * block_b * cap) > vmem_cap // 3:
            cap //= 2
        block_c = cap
        for cand in (cap, cap // 2, cap // 4, cap // 8):
            if cand >= 128 and C % cand == 0:
                block_c = cand
                break
        block_c = min(block_c, _round_up(C, 128))
    block_c = _round_up(int(block_c), 128)

    if batch_splits is None:
        batch_splits = _default_batch_splits()
    batch_splits = max(1, min(int(batch_splits), _cdiv(B, block_b)))

    b_pad = _round_up(B, block_b * batch_splits)
    c_pad = _round_up(C, block_c)
    tiles_per_split = b_pad // (block_b * batch_splits)
    num_c_tiles = c_pad // block_c
    has_class_pad = c_pad != C

    # ---- one-time normalization / layout plumbing in plain XLA --------------
    xf = x.astype(jnp.float32)
    xn = (xf * jax.lax.rsqrt(
        jnp.maximum(jnp.sum(xf * xf, axis=1, keepdims=True), _EPS2))
          ).astype(jnp.bfloat16)
    wf = weight.astype(jnp.float32)
    wns = (wf * jax.lax.rsqrt(
        jnp.maximum(jnp.sum(wf * wf, axis=1, keepdims=True), _EPS2))
           * scale).astype(jnp.bfloat16)                 # scale folded into W

    xn_p = jnp.pad(xn, ((0, b_pad - B), (0, 0)))
    w_t = jnp.pad(wns.T, ((0, 0), (0, c_pad - C)))       # (D, c_pad) bf16
    tgt_p = jnp.pad(target.astype(jnp.int32), (0, b_pad - B)).reshape(b_pad, 1)

    cos_m, sin_m = math.cos(margin), math.sin(margin)
    th = math.cos(math.pi - margin)
    mm = math.sin(math.pi - margin) * margin

    kernel = functools.partial(
        arcface_loss_kernel,
        s=float(scale), cos_m=cos_m, sin_m=sin_m, th=th, mm=mm,
        easy_margin=bool(easy_margin), block_b=block_b, block_c=block_c,
        tiles_per_split=tiles_per_split, num_classes=C,
        has_class_pad=has_class_pad)

    nbs = tiles_per_split
    grid = (batch_splits, num_c_tiles, tiles_per_split)

    # Rough live-VMEM estimate (double-buffered inputs + f32 temporaries +
    # resident accumulators), only used to size the scoped-VMEM limit.
    est = (2 * 2 * D * block_c            # W tile (bf16, x2 buffers)
           + 2 * 2 * block_b * D          # xn tile (bf16, x2 buffers)
           + 6 * 4 * block_b * block_c    # f32 logits / exp temporaries
           + 3 * 4 * 128 * b_pad          # resident accumulators (lane-padded)
           + 4 * 4 * 128 * block_b)       # target / loss tiles (lane-padded)
    vmem_limit = int(min(0.85 * vmem_cap, max(32 * 2**20, 2 * est)))

    per_sample = pl.pallas_call(
        kernel,
        out_shape=jax.ShapeDtypeStruct((b_pad, 1), jnp.float32),
        grid_spec=pltpu.PrefetchScalarGridSpec(
            num_scalar_prefetch=0,
            grid=grid,
            in_specs=[
                pl.BlockSpec((block_b, D), lambda bo, c, bi: (bo * nbs + bi, 0)),
                pl.BlockSpec((D, block_c), lambda bo, c, bi: (0, c)),
                pl.BlockSpec((block_b, 1), lambda bo, c, bi: (bo * nbs + bi, 0)),
            ],
            out_specs=pl.BlockSpec((block_b, 1),
                                   lambda bo, c, bi: (bo * nbs + bi, 0)),
            scratch_shapes=[
                pltpu.VMEM((b_pad, 1), jnp.float32),   # running max  m
                pltpu.VMEM((b_pad, 1), jnp.float32),   # running sum  l
                pltpu.VMEM((b_pad, 1), jnp.float32),   # s * cos(theta_target)
            ]),
        compiler_params=pltpu.CompilerParams(
            dimension_semantics=("parallel", "arbitrary", "arbitrary"),
            vmem_limit_bytes=vmem_limit),
        cost_estimate=pl.CostEstimate(
            flops=int(2 * b_pad * c_pad * D),
            transcendentals=int(b_pad * c_pad),
            bytes_accessed=int(batch_splits * c_pad * D * 2     # W once / split
                               + num_c_tiles * b_pad * D * 2    # xn restream
                               + b_pad * 8)),
    )(xn_p, w_t, tgt_p)

    # CrossEntropyLoss (mean) over the real batch rows.
    return jnp.sum(per_sample[:B, 0]) / B


# ----------------------------- references -----------------------------------
def _reference_f32(x, weight, target, *, margin=0.5, scale=30.0, easy_margin=True):
    """Pure-f32 JAX reference mirroring the PyTorch module."""
    cos_m, sin_m = math.cos(margin), math.sin(margin)
    th = math.cos(math.pi - margin)
    mm = math.sin(math.pi - margin) * margin
    xn = x / jnp.maximum(jnp.linalg.norm(x, axis=1, keepdims=True), _EPS)
    wn = weight / jnp.maximum(jnp.linalg.norm(weight, axis=1, keepdims=True), _EPS)
    cosine = xn @ wn.T
    sine = jnp.sqrt(jnp.maximum(1.0 - cosine ** 2, 0.0))
    phi = cosine * cos_m - sine * sin_m
    phi = (jnp.where(cosine > 0, phi, cosine) if easy_margin
           else jnp.where(cosine > th, phi, cosine - mm))
    one_hot = jax.nn.one_hot(target, cosine.shape[1], dtype=jnp.float32)
    logits = (one_hot * phi + (1.0 - one_hot) * cosine) * scale
    logp = jax.nn.log_softmax(logits, axis=-1)
    return -jnp.mean(jnp.sum(one_hot * logp, axis=-1))


def _reference_matched(x, weight, target, *, margin=0.5, scale=30.0, easy_margin=True):
    """Reference matching the kernel's bf16 / s-folded precision path."""
    cos_m, sin_m = math.cos(margin), math.sin(margin)
    th = math.cos(math.pi - margin)
    mm = math.sin(math.pi - margin) * margin
    xf = x.astype(jnp.float32)
    xn = (xf * jax.lax.rsqrt(
        jnp.maximum(jnp.sum(xf * xf, axis=1, keepdims=True), _EPS2))
          ).astype(jnp.bfloat16)
    wf = weight.astype(jnp.float32)
    wns = (wf * jax.lax.rsqrt(
        jnp.maximum(jnp.sum(wf * wf, axis=1, keepdims=True), _EPS2))
           * scale).astype(jnp.bfloat16)
    z = jnp.dot(xn, wns.T, preferred_element_type=jnp.float32)    # s * cosine
    cos = z * (1.0 / scale)
    sin = jnp.sqrt(jnp.maximum(1.0 - cos * cos, 0.0))
    phi = cos * cos_m - sin * sin_m
    phi = (jnp.where(cos > 0, phi, cos) if easy_margin
           else jnp.where(cos > th, phi, cos - mm))
    one_hot = jnp.arange(z.shape[1])[None, :] == target[:, None]
    logits = jnp.where(one_hot, scale * phi, z)
    logp = jax.nn.log_softmax(logits, axis=-1)
    return -jnp.mean(jnp.sum(jnp.where(one_hot, logp, 0.0), axis=-1))


if __name__ == "__main__":
    key = jax.random.PRNGKey(0)

    def make_inputs(k, B, D, C, target_mode):
        kx, kw = jax.random.split(k, 2)
        x = jax.random.normal(kx, (B, D), dtype=jnp.float32)
        bound = math.sqrt(6.0 / (D + C))          # xavier_uniform_ for (C, D)
        weight = jax.random.uniform(kw, (C, D), dtype=jnp.float32,
                                    minval=-bound, maxval=bound)
        xn = x / jnp.maximum(jnp.linalg.norm(x, axis=1, keepdims=True), _EPS)
        wn = weight / jnp.maximum(jnp.linalg.norm(weight, axis=1, keepdims=True), _EPS)
        cos = xn @ wn.T
        if target_mode == "max":        # cos_tgt clearly > 0 (margin branch)
            target = jnp.argmax(cos, axis=1).astype(jnp.int32)
        elif target_mode == "min":      # cos_tgt clearly < 0 (fallback branch)
            target = jnp.argmin(cos, axis=1).astype(jnp.int32)
        else:
            target = jax.random.randint(jax.random.fold_in(k, 7), (B,), 0, C,
                                        dtype=jnp.int32)
        return x, weight, target

    cases = [
        # (B, D, C, easy_margin, target_mode, wrapper kwargs)
        (12, 128, 320, True,  "max",  dict(block_b=8, block_c=128, batch_splits=2)),
        (16, 128, 256, False, "rand", dict(block_b=8, block_c=128, batch_splits=1)),
        (24, 256, 512, True,  "min",  dict()),     # auto block sizes / auto split
    ]

    for i, (B, D, C, easy, tmode, kw) in enumerate(cases):
        key, sub = jax.random.split(key)
        x, weight, target = make_inputs(sub, B, D, C, tmode)

        loss = jax.block_until_ready(
            arcface_loss(x, weight, target, margin=0.5, scale=30.0,
                         easy_margin=easy, **kw))

        ref_m = _reference_matched(x, weight, target, margin=0.5, scale=30.0,
                                   easy_margin=easy)
        ref_f = _reference_f32(x, weight, target, margin=0.5, scale=30.0,
                               easy_margin=easy)

        assert bool(jnp.isfinite(loss)), (i, loss)
        assert jnp.allclose(loss, ref_m, atol=2e-3, rtol=2e-3), (i, loss, ref_m)
        assert jnp.allclose(loss, ref_f, atol=2e-1, rtol=5e-2), (i, loss, ref_f)

    print("KERNEL_OK")
</pallas_src>

<mosaic_0001>
module attributes {stable_mosaic.version = 11 : i64} {
  func.func @arcface_loss_kernel(%arg0: i32, %arg1: i32, %arg2: i32, %arg3: memref<8x128xbf16, #tpu.memory_space<vmem>>, %arg4: memref<128x128xbf16, #tpu.memory_space<vmem>>, %arg5: memref<8x1xi32, #tpu.memory_space<vmem>>, %arg6: memref<8x1xf32, #tpu.memory_space<vmem>>, %arg7: memref<16x1xf32, #tpu.memory_space<vmem>>, %arg8: memref<16x1xf32, #tpu.memory_space<vmem>>, %arg9: memref<16x1xf32, #tpu.memory_space<vmem>>) attributes {dimension_semantics = [#tpu.dimension_semantics<parallel>, #tpu.dimension_semantics<arbitrary>, #tpu.dimension_semantics<arbitrary>], iteration_bounds = array<i64: 2, 3, 1>, scalar_prefetch = 0 : i64, scratch_operands = 3 : i64, tpu.core_type = #tpu.core_type<tc>, window_params = [{transform_indices = @transform_0, window_bounds = array<i64: 8, 128>}, {transform_indices = @transform_1, window_bounds = array<i64: 128, 128>}, {transform_indices = @transform_2, window_bounds = array<i64: 8, 1>}, {transform_indices = @transform_3, window_bounds = array<i64: 8, 1>}]} {
    %c1_i32 = arith.constant 1 : i32
    %0 = arith.muli %arg0, %c1_i32 : i32
    %1 = arith.addi %0, %arg2 : i32
    %c8_i32 = arith.constant 8 : i32
    %2 = arith.muli %1, %c8_i32 : i32
    %3 = tpu.assume_multiple %2, 8 : i32
    %c0_i32 = arith.constant 0 : i32
    %4 = arith.cmpi eq, %arg1, %c0_i32 : i32
    %5 = arith.extui %4 : i1 to i32
    %c0_i32_0 = arith.constant 0 : i32
    %6 = arith.cmpi ne, %5, %c0_i32_0 : i32
    scf.if %6 {
      %cst_35 = arith.constant -1.000000e+30 : f32
      %98 = vector.broadcast %cst_35 : f32 to vector<8x1xf32>
      %99 = arith.index_cast %3 : i32 to index
      %c0_36 = arith.constant 0 : index
      %100 = vector.load %arg7[%99, %c0_36] : memref<16x1xf32, #tpu.memory_space<vmem>>, vector<8x1xf32>
      tpu.vector_store %arg7[%99, %c0_36], %98 {strides = array<i32>} : memref<16x1xf32, #tpu.memory_space<vmem>>, vector<8x1xf32>,
      %cst_37 = arith.constant 0.000000e+00 : f32
      %101 = vector.broadcast %cst_37 : f32 to vector<8x1xf32>
      %102 = arith.index_cast %3 : i32 to index
      %c0_38 = arith.constant 0 : index
      %103 = vector.load %arg8[%102, %c0_38] : memref<16x1xf32, #tpu.memory_space<vmem>>, vector<8x1xf32>
      tpu.vector_store %arg8[%102, %c0_38], %101 {strides = array<i32>} : memref<16x1xf32, #tpu.memory_space<vmem>>, vector<8x1xf32>,
      %cst_39 = arith.constant 0.000000e+00 : f32
      %104 = vector.broadcast %cst_39 : f32 to vector<8x1xf32>
      %105 = arith.index_cast %3 : i32 to index
      %c0_40 = arith.constant 0 : index
      %106 = vector.load %arg9[%105, %c0_40] : memref<16x1xf32, #tpu.memory_space<vmem>>, vector<8x1xf32>
      tpu.vector_store %arg9[%105, %c0_40], %104 {strides = array<i32>} : memref<16x1xf32, #tpu.memory_space<vmem>>, vector<8x1xf32>,
    } else {
    }
    %c0 = arith.constant 0 : index
    %c0_1 = arith.constant 0 : index
    %7 = vector.load %arg3[%c0, %c0_1] : memref<8x128xbf16, #tpu.memory_space<vmem>>, vector<8x128xbf16>
    %c0_2 = arith.constant 0 : index
    %c0_3 = arith.constant 0 : index
    %8 = vector.load %arg4[%c0_2, %c0_3] : memref<128x128xbf16, #tpu.memory_space<vmem>>, vector<128x128xbf16>
    %cst = arith.constant dense<0.000000e+00> : vector<8x128xf32>
    %9 = tpu.matmul %7, %8, %cst {dimension_numbers = #tpu.dot_dimension_numbers<[1], [0], [0], [1], [0, 0, 1, 1], [], []>} : vector<8x128xbf16>, vector<128x128xbf16>, vector<8x128xf32> -> vector<8x128xf32>
    %10 = tpu.iota {dimensions = array<i32: 1>} : vector<8x128xi32>
    %c128_i32 = arith.constant 128 : i32
    %11 = arith.muli %arg1, %c128_i32 : i32
    %c320_i32 = arith.constant 320 : i32
    %12 = arith.subi %c320_i32, %11 : i32
    %13 = vector.broadcast %12 : i32 to vector<8x128xi32>
    %14 = arith.cmpi slt, %10, %13 : vector<8x128xi32>
    %cst_4 = arith.constant -1.000000e+30 : f32
    %15 = vector.broadcast %cst_4 : f32 to vector<8x128xf32>
    %16 = arith.select %14, %9, %15 : vector<8x128xi1>, vector<8x128xf32>
    %c0_5 = arith.constant 0 : index
    %c0_6 = arith.constant 0 : index
    %17 = vector.load %arg5[%c0_5, %c0_6] : memref<8x1xi32, #tpu.memory_space<vmem>>, vector<8x1xi32>
    %c128_i32_7 = arith.constant 128 : i32
    %18 = arith.muli %arg1, %c128_i32_7 : i32
    %19 = vector.broadcast %18 : i32 to vector<8x1xi32>
    %20 = arith.subi %17, %19 : vector<8x1xi32>
    %21 = vector.broadcast %20 : vector<8x1xi32> to vector<8x128xi32>
    %22 = arith.cmpi eq, %10, %21 : vector<8x128xi32>
    %cst_8 = arith.constant 0.000000e+00 : f32
    %23 = vector.broadcast %cst_8 : f32 to vector<8x128xf32>
    %24 = arith.select %22, %16, %23 : vector<8x128xi1>, vector<8x128xf32>
    %cst_9 = arith.constant dense<0.000000e+00> : vector<8xf32>
    %25 = vector.multi_reduction <add>, %24, %cst_9 [1] : vector<8x128xf32> to vector<8xf32>
    %26 = vector.shape_cast %25 : vector<8xf32> to vector<8x1xf32>
    %cst_10 = arith.constant 0.0333333351 : f32
    %27 = vector.broadcast %cst_10 : f32 to vector<8x1xf32>
    %28 = arith.mulf %26, %27 : vector<8x1xf32>
    %29 = arith.mulf %28, %28 : vector<8x1xf32>
    %cst_11 = arith.constant 1.000000e+00 : f32
    %30 = vector.broadcast %cst_11 : f32 to vector<8x1xf32>
    %31 = arith.subf %30, %29 : vector<8x1xf32>
    %cst_12 = arith.constant 0.000000e+00 : f32
    %32 = vector.broadcast %cst_12 : f32 to vector<8x1xf32>
    %33 = arith.maximumf %31, %32 : vector<8x1xf32>
    %34 = math.sqrt %33 : vector<8x1xf32>
    %cst_13 = arith.constant 0.87758255 : f32
    %35 = vector.broadcast %cst_13 : f32 to vector<8x1xf32>
    %36 = arith.mulf %28, %35 : vector<8x1xf32>
    %cst_14 = arith.constant 0.47942555 : f32
    %37 = vector.broadcast %cst_14 : f32 to vector<8x1xf32>
    %38 = arith.mulf %34, %37 : vector<8x1xf32>
    %39 = arith.subf %36, %38 : vector<8x1xf32>
    %cst_15 = arith.constant 0.000000e+00 : f32
    %40 = vector.broadcast %cst_15 : f32 to vector<8x1xf32>
    %41 = arith.cmpf ogt, %28, %40 : vector<8x1xf32>
    %42 = arith.select %41, %39, %28 : vector<8x1xi1>, vector<8x1xf32>
    %cst_16 = arith.constant 3.000000e+01 : f32
    %43 = vector.broadcast %cst_16 : f32 to vector<8x1xf32>
    %44 = arith.mulf %43, %42 : vector<8x1xf32>
    %45 = arith.subf %44, %26 : vector<8x1xf32>
    %cst_17 = arith.constant 0.000000e+00 : f32
    %46 = vector.shape_cast %45 : vector<8x1xf32> to vector<8x1xf32>
    %47 = vector.broadcast %46 : vector<8x1xf32> to vector<8x128xf32>
    %48 = vector.broadcast %cst_17 : f32 to vector<8x128xf32>
    %49 = arith.select %22, %47, %48 : vector<8x128xi1>, vector<8x128xf32>
    %50 = arith.addf %16, %49 : vector<8x128xf32>
    %51 = arith.index_cast %3 : i32 to index
    %c0_18 = arith.constant 0 : index
    %52 = vector.load %arg7[%51, %c0_18] : memref<16x1xf32, #tpu.memory_space<vmem>>, vector<8x1xf32>
    %cst_19 = arith.constant dense<0xFF800000> : vector<8xf32>
    %53 = vector.multi_reduction <maximumf>, %50, %cst_19 [1] : vector<8x128xf32> to vector<8xf32>
    %54 = vector.shape_cast %53 : vector<8xf32> to vector<8x1xf32>
    %55 = arith.maximumf %52, %54 : vector<8x1xf32>
    %56 = arith.subf %52, %55 : vector<8x1xf32>
    %57 = math.exp %56 : vector<8x1xf32>
    %58 = arith.index_cast %3 : i32 to index
    %c0_20 = arith.constant 0 : index
    %59 = vector.load %arg8[%58, %c0_20] : memref<16x1xf32, #tpu.memory_space<vmem>>, vector<8x1xf32>
    %60 = arith.mulf %57, %59 : vector<8x1xf32>
    %61 = vector.broadcast %55 : vector<8x1xf32> to vector<8x128xf32>
    %62 = arith.subf %50, %61 : vector<8x128xf32>
    %63 = math.exp %62 : vector<8x128xf32>
    %cst_21 = arith.constant dense<0.000000e+00> : vector<8xf32>
    %64 = vector.multi_reduction <add>, %63, %cst_21 [1] : vector<8x128xf32> to vector<8xf32>
    %65 = vector.shape_cast %64 : vector<8xf32> to vector<8x1xf32>
    %66 = arith.addf %60, %65 : vector<8x1xf32>
    %67 = arith.index_cast %3 : i32 to index
    %c0_22 = arith.constant 0 : index
    %68 = vector.load %arg9[%67, %c0_22] : memref<16x1xf32, #tpu.memory_space<vmem>>, vector<8x1xf32>
    %69 = arith.addf %68, %26 : vector<8x1xf32>
    %70 = arith.index_cast %3 : i32 to index
    %c0_23 = arith.constant 0 : index
    %71 = vector.load %arg7[%70, %c0_23] : memref<16x1xf32, #tpu.memory_space<vmem>>, vector<8x1xf32>
    tpu.vector_store %arg7[%70, %c0_23], %55 {strides = array<i32>} : memref<16x1xf32, #tpu.memory_space<vmem>>, vector<8x1xf32>,
    %72 = arith.index_cast %3 : i32 to index
    %c0_24 = arith.constant 0 : index
    %73 = vector.load %arg8[%72, %c0_24] : memref<16x1xf32, #tpu.memory_space<vmem>>, vector<8x1xf32>
    tpu.vector_store %arg8[%72, %c0_24], %66 {strides = array<i32>} : memref<16x1xf32, #tpu.memory_space<vmem>>, vector<8x1xf32>,
    %74 = arith.index_cast %3 : i32 to index
    %c0_25 = arith.constant 0 : index
    %75 = vector.load %arg9[%74, %c0_25] : memref<16x1xf32, #tpu.memory_space<vmem>>, vector<8x1xf32>
    tpu.vector_store %arg9[%74, %c0_25], %69 {strides = array<i32>} : memref<16x1xf32, #tpu.memory_space<vmem>>, vector<8x1xf32>,
    %76 = math.log %66 : vector<8x1xf32>
    %77 = arith.addf %55, %76 : vector<8x1xf32>
    %cst_26 = arith.constant 0.0333333351 : f32
    %78 = vector.broadcast %cst_26 : f32 to vector<8x1xf32>
    %79 = arith.mulf %69, %78 : vector<8x1xf32>
    %80 = arith.mulf %79, %79 : vector<8x1xf32>
    %cst_27 = arith.constant 1.000000e+00 : f32
    %81 = vector.broadcast %cst_27 : f32 to vector<8x1xf32>
    %82 = arith.subf %81, %80 : vector<8x1xf32>
    %cst_28 = arith.constant 0.000000e+00 : f32
    %83 = vector.broadcast %cst_28 : f32 to vector<8x1xf32>
    %84 = arith.maximumf %82, %83 : vector<8x1xf32>
    %85 = math.sqrt %84 : vector<8x1xf32>
    %cst_29 = arith.constant 0.87758255 : f32
    %86 = vector.broadcast %cst_29 : f32 to vector<8x1xf32>
    %87 = arith.mulf %79, %86 : vector<8x1xf32>
    %cst_30 = arith.constant 0.47942555 : f32
    %88 = vector.broadcast %cst_30 : f32 to vector<8x1xf32>
    %89 = arith.mulf %85, %88 : vector<8x1xf32>
    %90 = arith.subf %87, %89 : vector<8x1xf32>
    %cst_31 = arith.constant 0.000000e+00 : f32
    %91 = vector.broadcast %cst_31 : f32 to vector<8x1xf32>
    %92 = arith.cmpf ogt, %79, %91 : vector<8x1xf32>
    %93 = arith.select %92, %90, %79 : vector<8x1xi1>, vector<8x1xf32>
    %cst_32 = arith.constant 3.000000e+01 : f32
    %94 = vector.broadcast %cst_32 : f32 to vector<8x1xf32>
    %95 = arith.mulf %94, %93 : vector<8x1xf32>
    %96 = arith.subf %77, %95 : vector<8x1xf32>
    %c0_33 = arith.constant 0 : index
    %c0_34 = arith.constant 0 : index
    %97 = vector.load %arg6[%c0_33, %c0_34] : memref<8x1xf32, #tpu.memory_space<vmem>>, vector<8x1xf32>
    tpu.vector_store %arg6[%c0_33, %c0_34], %96 {strides = array<i32>} : memref<8x1xf32, #tpu.memory_space<vmem>>, vector<8x1xf32>,
    return
  }
  func.func @transform_0(%arg0: i32, %arg1: i32, %arg2: i32) -> (i32, i32) {
    %c1_i32 = arith.constant 1 : i32
    %0 = arith.muli %arg0, %c1_i32 : i32
    %1 = arith.addi %0, %arg2 : i32
    %c0_i32 = arith.constant 0 : i32
    %c0_i32_0 = arith.constant 0 : i32
    return %1, %c0_i32 : i32, i32
  }
  func.func @transform_1(%arg0: i32, %arg1: i32, %arg2: i32) -> (i32, i32) {
    %c0_i32 = arith.constant 0 : i32
    %c0_i32_0 = arith.constant 0 : i32
    return %c0_i32, %arg1 : i32, i32
  }
  func.func @transform_2(%arg0: i32, %arg1: i32, %arg2: i32) -> (i32, i32) {
    %c1_i32 = arith.constant 1 : i32
    %0 = arith.muli %arg0, %c1_i32 : i32
    %1 = arith.addi %0, %arg2 : i32
    %c0_i32 = arith.constant 0 : i32
    %c0_i32_0 = arith.constant 0 : i32
    return %1, %c0_i32 : i32, i32
  }
  func.func @transform_3(%arg0: i32, %arg1: i32, %arg2: i32) -> (i32, i32) {
    %c1_i32 = arith.constant 1 : i32
    %0 = arith.muli %arg0, %c1_i32 : i32
    %1 = arith.addi %0, %arg2 : i32
    %c0_i32 = arith.constant 0 : i32
    %c0_i32_0 = arith.constant 0 : i32
    return %1, %c0_i32 : i32, i32
  }
}

</mosaic_0001>

<llo_original>
// kernel: tpu_custom_call.1
$region0: #{tpu_custom_call.1}
  #allocation0 [shape = 'u32[]', space=smem, size = 0x4, offset = 0x4, fixed_abs, tag = 'smem constant byte address 0x4 - core index']
  #allocation1 [shape = 'u32[72,128]{1,0:T(1,128)}', space=vmem, size = 0x9000, scoped, tag = 'internal scratch']
  #allocation2 [shape = 'f32[16,1]{1,0:T(8,128)}', space=vmem, size = 0x2000, scoped, tag = 'scratch operand']
  #allocation3 [shape = 'f32[16,1]{1,0:T(8,128)}', space=vmem, size = 0x2000, scoped, tag = 'scratch operand']
  #allocation4 [shape = 'f32[16,1]{1,0:T(8,128)}', space=vmem, size = 0x2000, scoped, tag = 'scratch operand']
  %s0 = inlined_call_operand.vmem [shape: bf16[16,128], index: 0, kind: input, shape index: {}]
  %s1 = inlined_call_operand.hbm [shape: bf16[128,384], index: 1, kind: input, shape index: {}]
  %s2 = inlined_call_operand.vmem [shape: s32[16,1], index: 2, kind: input, shape index: {}]
  %s3 = inlined_call_operand.vmem [shape: f32[16,1], index: 3, kind: output, shape index: {}]
  %s4 = sld [smem:[#allocation0]]
  $region53: #{tpu_custom_call.1} parent=0
    _
  %s6 = ssub.s32 1, %s4
  %s7 = scalar_select 0, %s6, %s4
  $region1: #{tpu_custom_call.1} parent=0
    #allocation5 [shape = 'u8[65536]{0}', space=vmem, size = 0x10000, scoped, tag = 'input window, operand 1']
    #allocation6 [shape = 's32[2]{0}', space=sflag, size = 0x8, scoped, tag = 'scoped memory for tpu_custom_call.1']
    %8 = vsyncpa [#allocation6], 0
    %s9 = scalar_lea.sflag [#allocation6], 1
    %10 = vsyncpa %s9, 0
    loop: start=0, step=1, limit=8
    $region2: #{tpu_custom_call.1} parent=1 // loop_pre_header
      _
    $region3: #{tpu_custom_call.1} parent=1 // loop_header
      %s12 = sphi 0, %s16
      %p13 = scmp.ge.s32.totalorder %s12, 8
      %s19 = sphi 0, %s38
      %s20 = sphi 0, %s34
      %s21 = sphi 0, %s30
      %s22 = sphi 0, %s19
      %s23 = sphi 0, %s20
      %s24 = sphi 0, %s21
      %s25 = sphi 0, %s22
      %s26 = sphi 0, %s23
      %s27 = sphi 0, %s24
      %s43 = sphi 0, %s45
      %s46 = sphi 0, %s43
      %s47 = sphi 0, %s46
      %s63 = sphi 0, %s47
      %s69 = sphi 0, %s71
      %s72 = sphi 0, %s69
      %s73 = sphi 0, %s72
      %s89 = sphi 0, %s73
      %s97 = sphi 0, %s99
      %s100 = sphi 0, %s97
      %s101 = sphi 0, %s100
      %s117 = sphi 0, %s101
      %s125 = sphi 0, %s127
      %s128 = sphi 0, %s125
      %s129 = sphi 0, %s128
      %s145 = sphi 0, %s129
    $region4: #{tpu_custom_call.1} parent=1 // loop_header_branch
      %15 = sbr.rel (%p13) target = $region8
    $region5: #{tpu_custom_call.1} parent=1 // loop_body
      %s17 = ssub.s32 %s12, 1
      %s18 = ssub.s32 %s12, 2
      %s28 = sadd.s32 1, %s21
      %p29 = scmp.ge.s32.totalorder %s28, 1
      %s30 = scalar_select %p29, 0, %s28
      %s31 = sadd.s32 1, %s20
      %s32 = scalar_select %p29, %s31, %s20
      %p33 = scmp.ge.s32.totalorder %s32, 3
      %s34 = scalar_select %p33, 0, %s32
      %s35 = sadd.s32 1, %s19
      %s36 = scalar_select %p33, %s35, %s19
      %p37 = scmp.ge.s32.totalorder %s36, 2
      %s38 = scalar_select %p37, 0, %s36
      %s39 = sadd.s32 %s19, %s21
      %s40 = sadd.s32 %s38, %s30
      %s41 = ssub.s32 %s39, %s40
      %p42 = scmp.eq.s32.totalorder %s41, 0
      %s44 = sadd.s32 %s43, 1
      %s45 = scalar_select %p42, %s43, %s44
      %p48 = pneg %p42
      %p49 = scmp.eq.s32.totalorder %s12, 5
      %p50 = por %p48, %p49
      %p51 = scmp.ne.s32.totalorder %s43, %s46
      %p52 = scmp.eq.s32.totalorder %s12, 0
      %p53 = por %p51, %p52
      %p54 = scmp.ne.s32.totalorder %s43, %s46
      %p55 = scmp.eq.s32.totalorder %s17, 5
      %p56 = por %p54, %p55
      %p57 = scmp.ne.s32.totalorder %s46, %s47
      %p58 = scmp.eq.s32.totalorder %s17, 0
      %p59 = por %p57, %p58
      %p60 = scmp.ne.s32.totalorder %s46, %s47
      %p61 = scmp.eq.s32.totalorder %s18, 5
      %p62 = por %p60, %p61
      %p64 = scmp.ne.s32.totalorder %s47, %s63
      %p65 = scmp.eq.s32.totalorder %s18, 0
      %p66 = por %p64, %p65
      %s67 = ssub.s32 %s20, %s34
      %p68 = scmp.eq.s32.totalorder %s67, 0
      %s70 = sadd.s32 %s69, 1
      %s71 = scalar_select %p68, %s69, %s70
      %p74 = pneg %p68
      %p75 = scmp.eq.s32.totalorder %s12, 5
      %p76 = por %p74, %p75
      %p77 = scmp.ne.s32.totalorder %s69, %s72
      %p78 = scmp.eq.s32.totalorder %s12, 0
      %p79 = por %p77, %p78
      %p80 = scmp.ne.s32.totalorder %s69, %s72
      %p81 = scmp.eq.s32.totalorder %s17, 5
      %p82 = por %p80, %p81
      %p83 = scmp.ne.s32.totalorder %s72, %s73
      %p84 = scmp.eq.s32.totalorder %s17, 0
      %p85 = por %p83, %p84
      %p86 = scmp.ne.s32.totalorder %s72, %s73
      %p87 = scmp.eq.s32.totalorder %s18, 5
      %p88 = por %p86, %p87
      %p90 = scmp.ne.s32.totalorder %s73, %s89
      %p91 = scmp.eq.s32.totalorder %s18, 0
      %p92 = por %p90, %p91
      %s93 = sadd.s32 %s19, %s21
      %s94 = sadd.s32 %s38, %s30
      %s95 = ssub.s32 %s93, %s94
      %p96 = scmp.eq.s32.totalorder %s95, 0
      %s98 = sadd.s32 %s97, 1
      %s99 = scalar_select %p96, %s97, %s98
      %p102 = pneg %p96
      %p103 = scmp.eq.s32.totalorder %s12, 5
      %p104 = por %p102, %p103
      %p105 = scmp.ne.s32.totalorder %s97, %s100
      %p106 = scmp.eq.s32.totalorder %s12, 0
      %p107 = por %p105, %p106
      %p108 = scmp.ne.s32.totalorder %s97, %s100
      %p109 = scmp.eq.s32.totalorder %s17, 5
      %p110 = por %p108, %p109
      %p111 = scmp.ne.s32.totalorder %s100, %s101
      %p112 = scmp.eq.s32.totalorder %s17, 0
      %p113 = por %p111, %p112
      %p114 = scmp.ne.s32.totalorder %s100, %s101
      %p115 = scmp.eq.s32.totalorder %s18, 5
      %p116 = por %p114, %p115
      %p118 = scmp.ne.s32.totalorder %s101, %s117
      %p119 = scmp.eq.s32.totalorder %s18, 0
      %p120 = por %p118, %p119
      %s121 = sadd.s32 %s19, %s21
      %s122 = sadd.s32 %s38, %s30
      %s123 = ssub.s32 %s121, %s122
      %p124 = scmp.eq.s32.totalorder %s123, 0
      %s126 = sadd.s32 %s125, 1
      %s127 = scalar_select %p124, %s125, %s126
      %p130 = pneg %p124
      %p131 = scmp.eq.s32.totalorder %s12, 5
      %p132 = por %p130, %p131
      %p133 = scmp.ne.s32.totalorder %s125, %s128
      %p134 = scmp.eq.s32.totalorder %s12, 0
      %p135 = por %p133, %p134
      %p136 = scmp.ne.s32.totalorder %s125, %s128
      %p137 = scmp.eq.s32.totalorder %s17, 5
      %p138 = por %p136, %p137
      %p139 = scmp.ne.s32.totalorder %s128, %s129
      %p140 = scmp.eq.s32.totalorder %s17, 0
      %p141 = por %p139, %p140
      %p142 = scmp.ne.s32.totalorder %s128, %s129
      %p143 = scmp.eq.s32.totalorder %s18, 5
      %p144 = por %p142, %p143
      %p146 = scmp.ne.s32.totalorder %s129, %s145
      %p147 = scmp.eq.s32.totalorder %s18, 0
      %p148 = por %p146, %p147
      %p149 = scmp.le.s32.totalorder 1, %s12
      %p150 = scmp.lt.s32.totalorder %s12, 7
      %p151 = pnand %p149, %p150
      %p152 = pneg %p151
      // Predicated region
      $region9: #{tpu_custom_call.1} parent=5 // pred_check
        _
      $region10: #{tpu_custom_call.1} parent=5 // pred_check_branch
        %154 = sbr.rel (%p151) target = $region12
      $region11: #{tpu_custom_call.1} parent=5 // pred_region
        %s155 = ssub.s32 %s12, 1
      $region12: #{tpu_custom_call.1} parent=5 // pred_fallthru
        _
      %p156 = scmp.lt.s32.totalorder %s12, 6
      // Predicated region
      $region13: #{tpu_custom_call.1} parent=5 // pred_check
        %p157 = pneg %p156
      $region14: #{tpu_custom_call.1} parent=5 // pred_check_branch
        %159 = sbr.rel (%p157) target = $region16
      $region15: #{tpu_custom_call.1} parent=5 // pred_region
        // Predicated region
        $region17: #{tpu_custom_call.1} parent=15 // pred_check
          %p160 = pneg %p53
        $region18: #{tpu_custom_call.1} parent=15 // pred_check_branch
          %162 = sbr.rel (%p160) target = $region20
        $region19: #{tpu_custom_call.1} parent=15 // pred_region
          %s163 = sadd.s32 %s19, %s21
          %p164 = scmp.lt.s32.totalorder %s163, 1
          %s165 = scalar_select %p164, %s163, 1
          %s166 = smul.addr %s165, 4
          %s167 = scalar_lea.vmem %s0, %s166
          %s168 = sadd.s32 %s19, %s21
        $region20: #{tpu_custom_call.1} parent=15 // pred_fallthru
          _
        // Predicated region
        $region21: #{tpu_custom_call.1} parent=15 // pred_check
          %p169 = pneg %p79
        $region22: #{tpu_custom_call.1} parent=15 // pred_check_branch
          %171 = sbr.rel (%p169) target = $region24
        $region23: #{tpu_custom_call.1} parent=15 // pred_region
          %s172 = sand.u32 %s69, 1
          %s173 = scalar_lea.sflag [#allocation6], %s172
          %s174 = sand.u32 %s69, 1
          %s175 = smul.addr %s174, 64
          %s176 = scalar_lea.vmem [#allocation5], %s175
          %178 = vsyncadd %s173, 0
          %s179 = smul.addr %s20, 4
          %s180 = scalar_lea.hbm %s1, %s179
          %s181 = sshll.u32 %s180, 4
          %s182 = int_to_ptr.hbm [resolvable:$true] %s181
          %s183 = sshll.u32 %s176, 4
          %s184 = int_to_ptr.vmem [resolvable:$true] %s183
          %189 = dma.hbm_to_vmem [thread:$0]  %s182, 1024, %s184, %s173, 192, 64, 4
        $region24: #{tpu_custom_call.1} parent=15 // pred_fallthru
          _
        // Predicated region
        $region25: #{tpu_custom_call.1} parent=15 // pred_check
          %p190 = pneg %p107
        $region26: #{tpu_custom_call.1} parent=15 // pred_check_branch
          %192 = sbr.rel (%p190) target = $region28
        $region27: #{tpu_custom_call.1} parent=15 // pred_region
          %s193 = sadd.s32 %s19, %s21
          %p194 = scmp.lt.s32.totalorder %s193, 1
          %s195 = scalar_select %p194, %s193, 1
          %s196 = smul.addr %s195, 8
          %s197 = scalar_lea.vmem %s2, %s196
          %s198 = sadd.s32 %s19, %s21
        $region28: #{tpu_custom_call.1} parent=15 // pred_fallthru
          _
      $region16: #{tpu_custom_call.1} parent=5 // pred_fallthru
        _
      %p199 = scmp.le.s32.totalorder 1, %s12
      %p200 = scmp.lt.s32.totalorder %s12, 7
      %p201 = pnand %p199, %p200
      %p202 = pneg %p201
      // Predicated region
      $region29: #{tpu_custom_call.1} parent=5 // pred_check
        _
      $region30: #{tpu_custom_call.1} parent=5 // pred_check_branch
        %204 = sbr.rel (%p201) target = $region32
      $region31: #{tpu_custom_call.1} parent=5 // pred_region
        %s205 = ssub.s32 %s12, 1
        %s206 = sand.u32 %s72, 1
        %s207 = scalar_lea.sflag [#allocation6], %s206
        %s208 = sand.u32 %s72, 1
        %s209 = smul.addr %s208, 64
        %s210 = scalar_lea.vmem [#allocation5], %s209
        // Predicated region
        $region33: #{tpu_custom_call.1} parent=31 // pred_check
          %p211 = pneg %p85
        $region34: #{tpu_custom_call.1} parent=31 // pred_check_branch
          %213 = sbr.rel (%p211) target = $region36
        $region35: #{tpu_custom_call.1} parent=31 // pred_region
          %215 = dma.done %s207, 1024
        $region36: #{tpu_custom_call.1} parent=31 // pred_fallthru
          _
        %s216 = sadd.s32 %s22, %s24
        %p217 = scmp.lt.s32.totalorder %s216, 1
        %s218 = scalar_select %p217, %s216, 1
        %s219 = smul.addr %s218, 4
        %s220 = scalar_lea.vmem %s0, %s219
        %p221 = pneg %p59
        %p222 = pneg %p56
        %s223 = sand.u32 %s72, 1
        %s224 = scalar_lea.sflag [#allocation6], %s223
        %s225 = sand.u32 %s72, 1
        %s226 = smul.addr %s225, 64
        %s227 = scalar_lea.vmem [#allocation5], %s226
        %p228 = pneg %p85
        %p229 = pneg %p82
        %s230 = sadd.s32 %s22, %s24
        %p231 = scmp.lt.s32.totalorder %s230, 1
        %s232 = scalar_select %p231, %s230, 1
        %s233 = smul.addr %s232, 8
        %s234 = scalar_lea.vmem %s2, %s233
        %p235 = pneg %p113
        %p236 = pneg %p110
        %p237 = pneg %p141
        %p238 = pneg %p138
        %s239 = sadd.s32 %s22, %s24
        %p240 = scmp.lt.s32.totalorder %s239, 1
        %s241 = scalar_select %p240, %s239, 1
        %s242 = smul.addr %s241, 8
        %s243 = scalar_lea.vmem %s3, %s242
        %s244 = sadd.s32 %s22, %s24
        %p245 = scmp.lt.s32.totalorder %s244, 1
        %s246 = scalar_select %p245, %s244, 1
        %s247 = smul.addr %s246, 4
        %s248 = scalar_lea.vmem %s0, %s247
        %s249 = sadd.s32 %s22, %s24
        %s250 = sadd.s32 %s22, %s24
        %p251 = scmp.lt.s32.totalorder %s250, 1
        %s252 = scalar_select %p251, %s250, 1
        %s253 = smul.addr %s252, 8
        %s254 = scalar_lea.vmem %s2, %s253
        %s255 = sadd.s32 %s22, %s24
        %s256 = sadd.s32 %s22, %s24
        %p257 = scmp.lt.s32.totalorder %s256, 1
        %s258 = scalar_select %p257, %s256, 1
        %s259 = smul.addr %s258, 8
        %s260 = scalar_lea.vmem %s3, %s259
        %s261 = sadd.s32 %s22, %s24
        %s262 = sadd.s32 %s22, %s24
        %s263 = smul.u32 %s262, 8
        %p264 = scmp.eq.s32.totalorder %s23, 0
        // Predicated region
        $region37: #{tpu_custom_call.1} parent=31 // pred_check
          %p265 = pneg %p264
        $region38: #{tpu_custom_call.1} parent=31 // pred_check_branch
          %267 = sbr.rel (%p265) target = $region40
        $region39: #{tpu_custom_call.1} parent=31 // pred_region
          %s268 = scalar_lea.vmem [#allocation2], %s263
          %vm269 = vcmask 7168
          %270 = vst.msk [vmem:[%s268] sm:$0xff] %vm269, -1e+30
          %s271 = scalar_lea.vmem [#allocation3], %s263
          %272 = vst.msk [vmem:[%s271] sm:$0xff] %vm269, 0.0
          %s273 = scalar_lea.vmem [#allocation4], %s263
          %274 = vst.msk [vmem:[%s273] sm:$0xff] %vm269, 0.0
        $region40: #{tpu_custom_call.1} parent=31 // pred_fallthru
          _
        %v275 = vld [vmem:[%s248] sm:$0xf]
        %v276 = vld [vmem:[%s210] sm:$0xf]
        %v277 = vld [vmem:[%s210 + $0x4] sm:$0xf]
        %v278 = vld [vmem:[%s210 + $0x8] sm:$0xf]
        %v279 = vld [vmem:[%s210 + $0xc] sm:$0xf]
        %v280 = vld [vmem:[%s210 + $0x10] sm:$0xf]
        %v281 = vld [vmem:[%s210 + $0x14] sm:$0xf]
        %v282 = vld [vmem:[%s210 + $0x18] sm:$0xf]
        %v283 = vld [vmem:[%s210 + $0x1c] sm:$0xf]
        %v284 = vld [vmem:[%s210 + $0x20] sm:$0xf]
        %v285 = vld [vmem:[%s210 + $0x24] sm:$0xf]
        %v286 = vld [vmem:[%s210 + $0x28] sm:$0xf]
        %v287 = vld [vmem:[%s210 + $0x2c] sm:$0xf]
        %v288 = vld [vmem:[%s210 + $0x30] sm:$0xf]
        %v289 = vld [vmem:[%s210 + $0x34] sm:$0xf]
        %v290 = vld [vmem:[%s210 + $0x38] sm:$0xf]
        %v291 = vld [vmem:[%s210 + $0x3c] sm:$0xf]
        %v308 = vunpack.c.l.b16 %v276
        %v309 = vunpack.c.l.b16 %v277
        %v310 = vunpack.c.l.b16 %v278
        %v311 = vunpack.c.l.b16 %v279
        %v312 = vunpack.c.l.b16 %v280
        %v313 = vunpack.c.l.b16 %v281
        %v314 = vunpack.c.l.b16 %v282
        %v315 = vunpack.c.l.b16 %v283
        %v316 = vunpack.c.l.b16 %v284
        %v317 = vunpack.c.l.b16 %v285
        %v318 = vunpack.c.l.b16 %v286
        %v319 = vunpack.c.l.b16 %v287
        %v320 = vunpack.c.l.b16 %v288
        %v321 = vunpack.c.l.b16 %v289
        %v322 = vunpack.c.l.b16 %v290
        %v323 = vunpack.c.l.b16 %v291
        %v324 = vpack.c.b16 %v309, %v308
        %v325 = vpack.c.b16 %v311, %v310
        %v326 = vpack.c.b16 %v313, %v312
        %v327 = vpack.c.b16 %v315, %v314
        %v328 = vpack.c.b16 %v317, %v316
        %v329 = vpack.c.b16 %v319, %v318
        %v330 = vpack.c.b16 %v321, %v320
        %v331 = vpack.c.b16 %v323, %v322
        %340 = vmatpush.bf16.msra.mxu0 %v331
        %341 = vmatpush.bf16.msra.mxu0 %v330
        %342 = vmatpush.bf16.msra.mxu0 %v329
        %343 = vmatpush.bf16.msra.mxu0 %v328
        %344 = vmatpush.bf16.msra.mxu0 %v327
        %345 = vmatpush.bf16.msra.mxu0 %v326
        %346 = vmatpush.bf16.msra.mxu0 %v325
        %347 = vmatpush.bf16.msra.mxu0 %v324
        %348 = vmatmul.bf16.gmra.mxu0 %v275
        %v349 = vpop.f32.mrf.mxu0
        %v350 = vadd.f32 0.0, %v349
        %v351 = vpop.f32.mrf.mxu0
        %352 = vdwg.mxu0
        %v353 = vlaneseq
        %v354 = vand.u32 %v353, 127
        %s355 = smul.u32 %s23, 128
        %s356 = ssub.s32 320, %s355
        %v357 = vstv %s356
        %vm358 = vcmp.lt.s32.totalorder %v354, %v357
        %v359 = vsel %vm358, %v350, -1e+30
        %v360 = vld [vmem:[%s254] sm:$0xff]
        %v361 = vstv %s355
        %v362 = vsub.s32 %v360, %v361
        %363 = vset.pattern.permute.xlu0 0
        %364 = vperm.xlu0 %363, %v362
        %v365 = vpop.permute.xlu0 %364
        %vm366 = vcmp.eq.s32.totalorder %v354, %v365
        %v367 = vsel %vm366, %v359, 0.0
        %368 = vadd.xlane.f32.xlu0 %v367
        %v369 = vpop.xlane.xlu0 %368
        %v370 = vmul.f32 %v369, 0.033333335
        %v371 = vmul.f32 %v370, %v370
        %v372 = vsub.f32 1.0, %v371
        %v373 = vmax.f32 %v372, 0.0
        %v374 = vrsqrt.pop %v373
        %v375 = vmul.f32 %v374, %v373
        %v376 = vmul.f32 %v375, %v374
        %v377 = vmul.f32 0.5, %v376
        %v378 = vsub.f32 1.5, %v377
        %v379 = vmul.f32 %v374, %v378
        %v380 = vmul.f32 %v373, %v379
        %vm381 = vcmp.eq.f32.partialorder %v373, inf
        %v382 = vsel %vm381, %v373, %v380
        %vm383 = vcmp.eq.f32.partialorder %v373, 0.0
        %v384 = vand.u32 %v373, 2147483648
        %v385 = vsel %vm383, %v384, %v382
        %v386 = vmul.f32 %v370, 0.87758255
        %v387 = vmul.f32 %v385, 0.47942555
        %v388 = vsub.f32 %v386, %v387
        %vm389 = vcmp.gt.f32.partialorder %v370, 0.0
        %v390 = vsel %vm389, %v388, %v370
        %v391 = vmul.f32 %v390, 30.0
        %v392 = vsub.f32 %v391, %v369
        %v393 = vsel %vm366, %v392, 0.0
        %v394 = vadd.f32 %v359, %v393
        %s395 = scalar_lea.vmem [#allocation2], %s263
        %v396 = vld [vmem:[%s395] sm:$0xff]
        %397 = vmax.xlane.f32.xlu0 %v394
        %v398 = vpop.xlane.xlu0 %397
        %v399 = vmax.f32 %v396, %v398
        %v400 = vsub.f32 %v396, %v399
        %v401 = vmul.f32 %v400, 1.442695
        %v402 = vpow.pop %v401
        %s403 = scalar_lea.vmem [#allocation3], %s263
        %v404 = vld [vmem:[%s403] sm:$0xff]
        %v405 = vmul.f32 %v402, %v404
        %407 = vset.pattern.permute.xlu0 0
        %408 = vperm.xlu0 %407, %v399
        %v409 = vpop.permute.xlu0 %408
        %v411 = vsub.f32 %v394, %v409
        %v412 = vmul.f32 %v411, 1.442695
        %v413 = vpow.pop %v412
        %414 = vadd.xlane.f32.xlu0 %v413
        %v415 = vpop.xlane.xlu0 %414
        %v416 = vadd.f32 %v405, %v415
        %s417 = scalar_lea.vmem [#allocation4], %s263
        %v418 = vld [vmem:[%s417] sm:$0xff]
        %v419 = vadd.f32 %v418, %v369
        %vm420 = vcmask 7168
        %421 = vst.msk [vmem:[%s395] sm:$0xff] %vm420, %v399
        %422 = vst.msk [vmem:[%s403] sm:$0xff] %vm420, %v416
        %423 = vst.msk [vmem:[%s417] sm:$0xff] %vm420, %v419
        %v424 = vlog2.pop %v416
        %v425 = vmul.f32 %v424, 0.6931472
        %v426 = vadd.f32 %v399, %v425
        %v427 = vmul.f32 %v419, 0.033333335
        %v428 = vmul.f32 %v427, %v427
        %v429 = vsub.f32 1.0, %v428
        %v430 = vmax.f32 %v429, 0.0
        %v431 = vrsqrt.pop %v430
        %v432 = vmul.f32 %v431, %v430
        %v433 = vmul.f32 %v432, %v431
        %v434 = vmul.f32 0.5, %v433
        %v435 = vsub.f32 1.5, %v434
        %v436 = vmul.f32 %v431, %v435
        %v437 = vmul.f32 %v430, %v436
        %vm438 = vcmp.eq.f32.partialorder %v430, inf
        %v439 = vsel %vm438, %v430, %v437
        %vm440 = vcmp.eq.f32.partialorder %v430, 0.0
        %v441 = vand.u32 %v430, 2147483648
        %v442 = vsel %vm440, %v441, %v439
        %v443 = vmul.f32 %v427, 0.87758255
        %v444 = vmul.f32 %v442, 0.47942555
        %v445 = vsub.f32 %v443, %v444
        %vm446 = vcmp.gt.f32.partialorder %v427, 0.0
        %v447 = vsel %vm446, %v445, %v427
        %v448 = vmul.f32 %v447, 30.0
        %v449 = vsub.f32 %v426, %v448
        %450 = vst.msk [vmem:[%s260] sm:$0xff] %vm420, %v449
        %s451 = sadd.s32 %s22, %s24
        %p452 = scmp.lt.s32.totalorder %s451, 1
        %s453 = scalar_select %p452, %s451, 1
        %s454 = smul.addr %s453, 8
        %s455 = scalar_lea.vmem %s3, %s454
        // Predicated region
        $region41: #{tpu_custom_call.1} parent=31 // pred_check
          %p456 = pneg %p138
        $region42: #{tpu_custom_call.1} parent=31 // pred_check_branch
          %458 = sbr.rel (%p456) target = $region44
        $region43: #{tpu_custom_call.1} parent=31 // pred_region
          %s459 = sadd.s32 %s22, %s24
        $region44: #{tpu_custom_call.1} parent=31 // pred_fallthru
          _
      $region32: #{tpu_custom_call.1} parent=5 // pred_fallthru
        _
      %p460 = scmp.le.s32.totalorder 2, %s12
      // Predicated region
      $region45: #{tpu_custom_call.1} parent=5 // pred_check
        %p461 = pneg %p460
      $region46: #{tpu_custom_call.1} parent=5 // pred_check_branch
        %463 = sbr.rel (%p461) target = $region48
      $region47: #{tpu_custom_call.1} parent=5 // pred_region
        %s464 = ssub.s32 %s12, 2
        // Predicated region
        $region49: #{tpu_custom_call.1} parent=47 // pred_check
          %p465 = pneg %p144
        $region50: #{tpu_custom_call.1} parent=47 // pred_check_branch
          %467 = sbr.rel (%p465) target = $region52
        $region51: #{tpu_custom_call.1} parent=47 // pred_region
          %s468 = sadd.s32 %s25, %s27
          %p469 = scmp.lt.s32.totalorder %s468, 1
          %s470 = scalar_select %p469, %s468, 1
          %s471 = smul.addr %s470, 8
          %s472 = scalar_lea.vmem %s3, %s471
        $region52: #{tpu_custom_call.1} parent=47 // pred_fallthru
          _
      $region48: #{tpu_custom_call.1} parent=5 // pred_fallthru
        _
    $region6: #{tpu_custom_call.1} parent=1 // loop_footer
      %s16 = sadd.s32 1, %s12
    $region7: #{tpu_custom_call.1} parent=1 // loop_footer_branch
      %11 = sbr.rel target = $region3
    $region8: #{tpu_custom_call.1} parent=1 // loop_exit
      _
    %473 = vsyncpa [#allocation6], 1
    %s474 = scalar_lea.sflag [#allocation6], 1
    %475 = vsyncpa %s474, 1

</llo_original>
